<compile_context>
chip_gen: v5e
topology: v5e:2x2
jax: 0.10.0
libtpu: 0.0.40
codegen_flags: <defaults>
</compile_context>

<pallas_src>
import jax
import jax.numpy as jnp
from jax import lax
from jax.experimental import pallas as pl
from jax.experimental.pallas import tpu as pltpu

LN_EPS = 1e-5


def _patch_embed_kernel(p_ref, w_ref, c_ref, o_ref):
    # One grid step == (row tile n, batch b): fused im2col-GEMM + bias + LayerNorm.
    p = p_ref[0]                                                        # (TN, CpP) bf16
    acc = jnp.dot(p, w_ref[...], preferred_element_type=jnp.float32)    # MXU, f32 acc
    c = c_ref[...]                                                      # (3, Ch) f32
    acc = acc + c[0:1, :]                                               # conv bias

    # LayerNorm over hidden dim; two-pass variance (stable, matches torch.nn.LayerNorm).
    mu = jnp.mean(acc, axis=-1, keepdims=True)
    xc = acc - mu
    var = jnp.mean(xc * xc, axis=-1, keepdims=True)
    y = xc * lax.rsqrt(var + LN_EPS) * c[1:2, :] + c[2:3, :]
    o_ref[0] = y.astype(o_ref.dtype)                                    # bf16 store


def segformer_overlap_patch_embeddings(pixel_values, params, patch_size, stride, *, tn=None):
    """pixel_values: (B, Cin, H, W) f32.  Returns (embeddings (B, N, hidden) bf16, H_out, W_out)."""
    B, Cin, H, W = pixel_values.shape
    k = patch_size
    pad = k // 2
    Ch = params['b_proj'].shape[-1]
    H_out = (H + 2 * pad - k) // stride + 1
    W_out = (W + 2 * pad - k) // stride + 1
    N = H_out * W_out
    Cp = Cin * k * k
    Cp_pad = pl.cdiv(Cp, 128) * 128            # lane-aligned K (147 -> 256)

    # ---- host-side im2col, built directly in (B, N, Cp) layout (NHWC slices concatenated
    # along the channel axis) so no (B, Cp, N)->(B, N, Cp) transpose is ever materialized.
    # TODO(synk): gather the overlapping patches in-kernel from the raw padded image
    # (memory_space=pl.ANY + manual row-band DMAs) to cut HBM reads by ~(k/stride)^2.
    x_nhwc = pixel_values.transpose(0, 2, 3, 1)                         # (B, H, W, Cin)
    xp = jnp.pad(x_nhwc, ((0, 0), (pad, pad), (pad, pad), (0, 0)))
    cols = [xp[:, kh:kh + stride * H_out:stride, kw:kw + stride * W_out:stride, :]
            for kh in range(k) for kw in range(k)]
    patches = jnp.concatenate(cols, axis=-1).reshape(B, N, Cp)          # col order (kh,kw,ci)

    # zero-pad K and cast operands to bf16 (MXU-native, half the HBM bytes)
    patches = jnp.pad(patches, ((0, 0), (0, 0), (0, Cp_pad - Cp))).astype(jnp.bfloat16)
    wmat = params['w_proj'].transpose(2, 3, 1, 0).reshape(Cp, Ch)       # OIHW -> (kh,kw,ci),o
    wmat = jnp.pad(wmat, ((0, Cp_pad - Cp), (0, 0))).astype(jnp.bfloat16)

    # conv bias / LN gamma / LN beta in one (3, Ch) constant operand
    consts = jnp.concatenate([params['b_proj'].reshape(1, Ch),
                              params['ln_g'].reshape(1, Ch),
                              params['ln_b'].reshape(1, Ch)], axis=0).astype(jnp.float32)

    # ---- sequence tile: large (amortizes ~0.35 us/step overhead, long DMAs) but capped
    # well under v7x's 64 MiB VMEM; guarantee >= 2 tiles along N when B == 1 (2 TCs).
    if tn is None:
        tn = 1024
    tn = min(tn, pl.cdiv(N, 8) * 8)
    tn = max(8, (tn // 8) * 8)
    if B == 1:
        while tn > 8 and pl.cdiv(N, tn) < 2:
            tn = max(8, tn // 2)
    n_tiles = pl.cdiv(N, tn)
    N_pad = n_tiles * tn
    if N_pad > N:
        patches = jnp.pad(patches, ((0, 0), (0, N_pad - N), (0, 0)))

    const2d = lambda n, b: (0, 0)
    out = pl.pallas_call(
        _patch_embed_kernel,
        out_shape=jax.ShapeDtypeStruct((B, N_pad, Ch), jnp.bfloat16),   # bf16 output stream
        grid=(n_tiles, B),
        in_specs=[
            pl.BlockSpec((1, tn, Cp_pad), lambda n, b: (b, n, 0)),      # im2col patches tile
            # NOTE: if xprof shows exposed DMA at large N, add pipeline_mode=pl.Buffered(3)
            # on the patches spec above (only large streamed input).
            pl.BlockSpec((Cp_pad, Ch), const2d),                        # conv weight as matmul
            pl.BlockSpec((3, Ch), const2d),                             # bias / gamma / beta
        ],
        out_specs=pl.BlockSpec((1, tn, Ch), lambda n, b: (b, n, 0)),
        compiler_params=pltpu.CompilerParams(
            dimension_semantics=("parallel", "parallel"),
            vmem_limit_bytes=48 * 1024 * 1024),
    )(patches, wmat, consts)

    if N_pad > N:
        out = out[:, :N, :]
    return out, H_out, W_out


# ---------------- pure-JAX reference (mirrors the PyTorch forward) ----------------
def reference_forward(pixel_values, params, patch_size, stride):
    B, Cin, H, W = pixel_values.shape
    pad = patch_size // 2
    emb = lax.conv_general_dilated(
        pixel_values, params['w_proj'], window_strides=(stride, stride),
        padding=[(pad, pad), (pad, pad)],
        dimension_numbers=('NCHW', 'OIHW', 'NCHW'))
    Ch = emb.shape[1]
    emb = emb + params['b_proj'].reshape(1, Ch, 1, 1)
    _, _, H_out, W_out = emb.shape
    emb = emb.reshape(B, Ch, H_out * W_out).transpose(0, 2, 1)     # (B, N, Ch)
    mu = emb.mean(-1, keepdims=True)
    var = ((emb - mu) ** 2).mean(-1, keepdims=True)
    emb = (emb - mu) / jnp.sqrt(var + LN_EPS) * params['ln_g'] + params['ln_b']
    return emb, H_out, W_out


if __name__ == "__main__":
    # Segformer stage-1-like geometry at small spatial size; hidden=128 keeps the
    # output lane-dense (unmasked stores). N = 16*16 = 256 -> single 256-row tile.
    B, Cin, H, W = 2, 3, 64, 64
    patch_size, stride, hidden = 7, 4, 128

    key = jax.random.PRNGKey(0)
    ks = jax.random.split(key, 5)
    s = 0.02
    params = {
        'w_proj': s * jax.random.normal(ks[0], (hidden, Cin, patch_size, patch_size), jnp.float32),
        'b_proj': s * jax.random.normal(ks[1], (1, hidden), jnp.float32),
        'ln_g': 1.0 + s * jax.random.normal(ks[2], (1, hidden), jnp.float32),
        'ln_b': s * jax.random.normal(ks[3], (1, hidden), jnp.float32),
    }
    x = jax.random.normal(ks[4], (B, Cin, H, W), jnp.float32)

    out, ho, wo = segformer_overlap_patch_embeddings(x, params, patch_size, stride)
    out = jax.block_until_ready(out)

    ref, ho_r, wo_r = reference_forward(x, params, patch_size, stride)
    ref = jax.block_until_ready(ref)

    assert (ho, wo) == (ho_r, wo_r)
    assert out.shape == (B, ho * wo, hidden)
    out_f32 = out.astype(jnp.float32)
    max_err = float(jnp.max(jnp.abs(out_f32 - ref)))
    assert jnp.allclose(out_f32, ref, atol=3e-2, rtol=3e-2), max_err   # bf16 matmul+store tolerance
    print("KERNEL_OK")
</pallas_src>

<mosaic_0001>
module attributes {stable_mosaic.version = 11 : i64} {
  func.func @_patch_embed_kernel(%arg0: i32, %arg1: i32, %arg2: memref<1x256x256xbf16, #tpu.memory_space<vmem>>, %arg3: memref<256x128xbf16, #tpu.memory_space<vmem>>, %arg4: memref<3x128xf32, #tpu.memory_space<vmem>>, %arg5: memref<1x256x128xbf16, #tpu.memory_space<vmem>>) attributes {dimension_semantics = [#tpu.dimension_semantics<parallel>, #tpu.dimension_semantics<parallel>], iteration_bounds = array<i64: 1, 2>, scalar_prefetch = 0 : i64, scratch_operands = 0 : i64, tpu.core_type = #tpu.core_type<tc>, window_params = [{transform_indices = @transform_0, window_bounds = array<i64: 1, 256, 256>}, {pipeline_mode = #tpu.pipeline_mode<synchronous>, transform_indices = @transform_1, window_bounds = array<i64: 256, 128>}, {pipeline_mode = #tpu.pipeline_mode<synchronous>, transform_indices = @transform_2, window_bounds = array<i64: 3, 128>}, {transform_indices = @transform_3, window_bounds = array<i64: 1, 256, 128>}]} {
    %c0 = arith.constant 0 : index
    %c0_0 = arith.constant 0 : index
    %c0_1 = arith.constant 0 : index
    %0 = vector.load %arg2[%c0, %c0_0, %c0_1] : memref<1x256x256xbf16, #tpu.memory_space<vmem>>, vector<1x256x256xbf16>
    %1 = vector.shape_cast %0 : vector<1x256x256xbf16> to vector<256x256xbf16>
    %c0_2 = arith.constant 0 : index
    %c0_3 = arith.constant 0 : index
    %2 = vector.load %arg3[%c0_2, %c0_3] : memref<256x128xbf16, #tpu.memory_space<vmem>>, vector<256x128xbf16>
    %cst = arith.constant dense<0.000000e+00> : vector<256x128xf32>
    %3 = tpu.matmul %1, %2, %cst {dimension_numbers = #tpu.dot_dimension_numbers<[1], [0], [0], [1], [0, 0, 1, 1], [], []>} : vector<256x256xbf16>, vector<256x128xbf16>, vector<256x128xf32> -> vector<256x128xf32>
    %c0_4 = arith.constant 0 : index
    %c0_5 = arith.constant 0 : index
    %4 = vector.load %arg4[%c0_4, %c0_5] : memref<3x128xf32, #tpu.memory_space<vmem>>, vector<3x128xf32>
    %5 = vector.extract_strided_slice %4 {offsets = [0, 0], sizes = [1, 128], strides = [1, 1]} : vector<3x128xf32> to vector<1x128xf32>
    %6 = vector.broadcast %5 : vector<1x128xf32> to vector<256x128xf32>
    %7 = arith.addf %3, %6 : vector<256x128xf32>
    %cst_6 = arith.constant dense<0.000000e+00> : vector<256xf32>
    %8 = vector.multi_reduction <add>, %7, %cst_6 [1] : vector<256x128xf32> to vector<256xf32>
    %9 = vector.shape_cast %8 : vector<256xf32> to vector<256x1xf32>
    %cst_7 = arith.constant 1.280000e+02 : f32
    %10 = vector.broadcast %cst_7 : f32 to vector<256x1xf32>
    %11 = arith.divf %9, %10 : vector<256x1xf32>
    %12 = vector.broadcast %11 : vector<256x1xf32> to vector<256x128xf32>
    %13 = arith.subf %7, %12 : vector<256x128xf32>
    %14 = arith.mulf %13, %13 : vector<256x128xf32>
    %cst_8 = arith.constant dense<0.000000e+00> : vector<256xf32>
    %15 = vector.multi_reduction <add>, %14, %cst_8 [1] : vector<256x128xf32> to vector<256xf32>
    %16 = vector.shape_cast %15 : vector<256xf32> to vector<256x1xf32>
    %cst_9 = arith.constant 1.280000e+02 : f32
    %17 = vector.broadcast %cst_9 : f32 to vector<256x1xf32>
    %18 = arith.divf %16, %17 : vector<256x1xf32>
    %cst_10 = arith.constant 9.99999974E-6 : f32
    %19 = vector.broadcast %cst_10 : f32 to vector<256x1xf32>
    %20 = arith.addf %18, %19 : vector<256x1xf32>
    %21 = math.rsqrt %20 : vector<256x1xf32>
    %22 = vector.broadcast %21 : vector<256x1xf32> to vector<256x128xf32>
    %23 = arith.mulf %13, %22 : vector<256x128xf32>
    %24 = vector.extract_strided_slice %4 {offsets = [1, 0], sizes = [1, 128], strides = [1, 1]} : vector<3x128xf32> to vector<1x128xf32>
    %25 = vector.broadcast %24 : vector<1x128xf32> to vector<256x128xf32>
    %26 = arith.mulf %23, %25 : vector<256x128xf32>
    %27 = vector.extract_strided_slice %4 {offsets = [2, 0], sizes = [1, 128], strides = [1, 1]} : vector<3x128xf32> to vector<1x128xf32>
    %28 = vector.broadcast %27 : vector<1x128xf32> to vector<256x128xf32>
    %29 = arith.addf %26, %28 : vector<256x128xf32>
    %30 = arith.truncf %29 : vector<256x128xf32> to vector<256x128xbf16>
    %c0_11 = arith.constant 0 : index
    %c0_12 = arith.constant 0 : index
    %c0_13 = arith.constant 0 : index
    %31 = vector.load %arg5[%c0_11, %c0_12, %c0_13] : memref<1x256x128xbf16, #tpu.memory_space<vmem>>, vector<1x256x128xbf16>
    %32 = vector.shape_cast %31 : vector<1x256x128xbf16> to vector<256x128xbf16>
    %33 = vector.shape_cast %30 : vector<256x128xbf16> to vector<1x256x128xbf16>
    tpu.vector_store %arg5[%c0_11, %c0_12, %c0_13], %33 {strides = array<i32>} : memref<1x256x128xbf16, #tpu.memory_space<vmem>>, vector<1x256x128xbf16>,
    return
  }
  func.func @transform_0(%arg0: i32, %arg1: i32) -> (i32, i32, i32) {
    %c0_i32 = arith.constant 0 : i32
    %c0_i32_0 = arith.constant 0 : i32
    return %arg1, %arg0, %c0_i32 : i32, i32, i32
  }
  func.func @transform_1(%arg0: i32, %arg1: i32) -> (i32, i32) {
    %c0_i32 = arith.constant 0 : i32
    %c0_i32_0 = arith.constant 0 : i32
    %c0_i32_1 = arith.constant 0 : i32
    return %c0_i32, %c0_i32_0 : i32, i32
  }
  func.func @transform_2(%arg0: i32, %arg1: i32) -> (i32, i32) {
    %c0_i32 = arith.constant 0 : i32
    %c0_i32_0 = arith.constant 0 : i32
    %c0_i32_1 = arith.constant 0 : i32
    return %c0_i32, %c0_i32_0 : i32, i32
  }
  func.func @transform_3(%arg0: i32, %arg1: i32) -> (i32, i32, i32) {
    %c0_i32 = arith.constant 0 : i32
    %c0_i32_0 = arith.constant 0 : i32
    return %arg1, %arg0, %c0_i32 : i32, i32, i32
  }
}

</mosaic_0001>

<llo_original>
// kernel: tpu_custom_call.1
$region0: #{tpu_custom_call.1}
  #allocation0 [shape = 'u32[]', space=smem, size = 0x4, offset = 0x4, fixed_abs, tag = 'smem constant byte address 0x4 - core index']
  #allocation1 [shape = 'u32[72,128]{1,0:T(1,128)}', space=vmem, size = 0x9000, scoped, tag = 'internal scratch']
  %s0 = inlined_call_operand.hbm [shape: bf16[2,256,256], index: 0, kind: input, shape index: {}]
  %s1 = inlined_call_operand.hbm [shape: bf16[256,128], index: 1, kind: input, shape index: {}]
  %s2 = inlined_call_operand.hbm [shape: f32[3,128], index: 2, kind: input, shape index: {}]
  %s3 = inlined_call_operand.hbm [shape: bf16[2,256,128], index: 3, kind: output, shape index: {}]
  %s4 = sld [smem:[#allocation0]]
  $region57: #{tpu_custom_call.1} parent=0
    _
  %s6 = ssub.s32 1, %s4
  %s7 = scalar_select 0, %s6, %s4
  $region1: #{tpu_custom_call.1} parent=0
    #allocation2 [shape = 'u8[262144]{0}', space=vmem, size = 0x40000, scoped, tag = 'input window, operand 0']
    #allocation3 [shape = 's32[2]{0}', space=sflag, size = 0x8, scoped, tag = 'scoped memory for tpu_custom_call.1']
    #allocation4 [shape = 's32[2]{0}', space=sflag, size = 0x8, scoped, tag = 'scoped memory for tpu_custom_call.1']
    #allocation5 [shape = 'u8[65536]{0}', space=vmem, size = 0x10000, scoped, tag = 'input window, operand 1, single buffered']
    #allocation6 [shape = 's32[1]{0}', space=sflag, size = 0x4, scoped, tag = 'scoped memory for tpu_custom_call.1']
    #allocation7 [shape = 'u8[2048]{0}', space=vmem, size = 0x800, scoped, tag = 'input window, operand 2, single buffered']
    #allocation8 [shape = 'u8[131072]{0}', space=vmem, size = 0x20000, scoped, tag = 'output window, operand 0']
    %8 = vsyncpa [#allocation3], 0
    %s9 = scalar_lea.sflag [#allocation3], 1
    %10 = vsyncpa %s9, 0
    %11 = vsyncpa [#allocation6], 0
    %12 = vsyncpa [#allocation4], 0
    %s13 = scalar_lea.sflag [#allocation4], 1
    %14 = vsyncpa %s13, 0
    loop: start=0, step=1, limit=4
    $region2: #{tpu_custom_call.1} parent=1 // loop_pre_header
      _
    $region3: #{tpu_custom_call.1} parent=1 // loop_header
      %s16 = sphi 0, %s20
      %p17 = scmp.ge.s32.totalorder %s16, 4
      %s23 = sphi 0, %s35
      %s24 = sphi 0, %s31
      %s25 = sphi 0, %s23
      %s26 = sphi 0, %s24
      %s27 = sphi 0, %s25
      %s28 = sphi 0, %s26
      %s40 = sphi 0, %s42
      %s43 = sphi 0, %s40
      %s44 = sphi 0, %s43
      %s60 = sphi 0, %s44
      %s64 = sphi 0, %s64
      %s66 = sphi 0, %s64
      %s67 = sphi 0, %s66
      %s81 = sphi 0, %s67
      %s85 = sphi 0, %s85
      %s87 = sphi 0, %s85
      %s88 = sphi 0, %s87
      %s102 = sphi 0, %s88
      %s110 = sphi 0, %s112
      %s113 = sphi 0, %s110
      %s114 = sphi 0, %s113
      %s130 = sphi 0, %s114
    $region4: #{tpu_custom_call.1} parent=1 // loop_header_branch
      %19 = sbr.rel (%p17) target = $region8
    $region5: #{tpu_custom_call.1} parent=1 // loop_body
      %s21 = ssub.s32 %s16, 1
      %s22 = ssub.s32 %s16, 2
      %s29 = sadd.s32 1, %s24
      %p30 = scmp.ge.s32.totalorder %s29, 2
      %s31 = scalar_select %p30, 0, %s29
      %s32 = sadd.s32 1, %s23
      %s33 = scalar_select %p30, %s32, %s23
      %p34 = scmp.ge.s32.totalorder %s33, 1
      %s35 = scalar_select %p34, 0, %s33
      %s36 = ssub.s32 %s24, %s31
      %s37 = ssub.s32 %s23, %s35
      %s38 = sor.u32 %s36, %s37
      %p39 = scmp.eq.s32.totalorder %s38, 0
      %s41 = sadd.s32 %s40, 1
      %s42 = scalar_select %p39, %s40, %s41
      %p45 = pneg %p39
      %p46 = scmp.eq.s32.totalorder %s16, 1
      %p47 = por %p45, %p46
      %p48 = scmp.ne.s32.totalorder %s40, %s43
      %p49 = scmp.eq.s32.totalorder %s16, 0
      %p50 = por %p48, %p49
      %p51 = scmp.ne.s32.totalorder %s40, %s43
      %p52 = scmp.eq.s32.totalorder %s21, 1
      %p53 = por %p51, %p52
      %p54 = scmp.ne.s32.totalorder %s43, %s44
      %p55 = scmp.eq.s32.totalorder %s21, 0
      %p56 = por %p54, %p55
      %p57 = scmp.ne.s32.totalorder %s43, %s44
      %p58 = scmp.eq.s32.totalorder %s22, 1
      %p59 = por %p57, %p58
      %p61 = scmp.ne.s32.totalorder %s44, %s60
      %p62 = scmp.eq.s32.totalorder %s22, 0
      %p63 = por %p61, %p62
      %s65 = sadd.s32 %s64, 1
      %p68 = scmp.eq.s32.totalorder %s16, 1
      %p69 = scmp.ne.s32.totalorder %s64, %s66
      %p70 = scmp.eq.s32.totalorder %s16, 0
      %p71 = por %p69, %p70
      %p72 = scmp.ne.s32.totalorder %s64, %s66
      %p73 = scmp.eq.s32.totalorder %s21, 1
      %p74 = por %p72, %p73
      %p75 = scmp.ne.s32.totalorder %s66, %s67
      %p76 = scmp.eq.s32.totalorder %s21, 0
      %p77 = por %p75, %p76
      %p78 = scmp.ne.s32.totalorder %s66, %s67
      %p79 = scmp.eq.s32.totalorder %s22, 1
      %p80 = por %p78, %p79
      %p82 = scmp.ne.s32.totalorder %s67, %s81
      %p83 = scmp.eq.s32.totalorder %s22, 0
      %p84 = por %p82, %p83
      %s86 = sadd.s32 %s85, 1
      %p89 = scmp.eq.s32.totalorder %s16, 1
      %p90 = scmp.ne.s32.totalorder %s85, %s87
      %p91 = scmp.eq.s32.totalorder %s16, 0
      %p92 = por %p90, %p91
      %p93 = scmp.ne.s32.totalorder %s85, %s87
      %p94 = scmp.eq.s32.totalorder %s21, 1
      %p95 = por %p93, %p94
      %p96 = scmp.ne.s32.totalorder %s87, %s88
      %p97 = scmp.eq.s32.totalorder %s21, 0
      %p98 = por %p96, %p97
      %p99 = scmp.ne.s32.totalorder %s87, %s88
      %p100 = scmp.eq.s32.totalorder %s22, 1
      %p101 = por %p99, %p100
      %p103 = scmp.ne.s32.totalorder %s88, %s102
      %p104 = scmp.eq.s32.totalorder %s22, 0
      %p105 = por %p103, %p104
      %s106 = ssub.s32 %s24, %s31
      %s107 = ssub.s32 %s23, %s35
      %s108 = sor.u32 %s106, %s107
      %p109 = scmp.eq.s32.totalorder %s108, 0
      %s111 = sadd.s32 %s110, 1
      %s112 = scalar_select %p109, %s110, %s111
      %p115 = pneg %p109
      %p116 = scmp.eq.s32.totalorder %s16, 1
      %p117 = por %p115, %p116
      %p118 = scmp.ne.s32.totalorder %s110, %s113
      %p119 = scmp.eq.s32.totalorder %s16, 0
      %p120 = por %p118, %p119
      %p121 = scmp.ne.s32.totalorder %s110, %s113
      %p122 = scmp.eq.s32.totalorder %s21, 1
      %p123 = por %p121, %p122
      %p124 = scmp.ne.s32.totalorder %s113, %s114
      %p125 = scmp.eq.s32.totalorder %s21, 0
      %p126 = por %p124, %p125
      %p127 = scmp.ne.s32.totalorder %s113, %s114
      %p128 = scmp.eq.s32.totalorder %s22, 1
      %p129 = por %p127, %p128
      %p131 = scmp.ne.s32.totalorder %s114, %s130
      %p132 = scmp.eq.s32.totalorder %s22, 0
      %p133 = por %p131, %p132
      %p134 = scmp.le.s32.totalorder 1, %s16
      %p135 = scmp.lt.s32.totalorder %s16, 3
      %p136 = pnand %p134, %p135
      %p137 = pneg %p136
      // Predicated region
      $region9: #{tpu_custom_call.1} parent=5 // pred_check
        _
      $region10: #{tpu_custom_call.1} parent=5 // pred_check_branch
        %139 = sbr.rel (%p136) target = $region12
      $region11: #{tpu_custom_call.1} parent=5 // pred_region
        %s140 = ssub.s32 %s16, 1
        // Predicated region
        $region13: #{tpu_custom_call.1} parent=11 // pred_check
          %p141 = pneg %p77
        $region14: #{tpu_custom_call.1} parent=11 // pred_check_branch
          %143 = sbr.rel (%p141) target = $region16
        $region15: #{tpu_custom_call.1} parent=11 // pred_region
          %145 = vsyncadd [#allocation6], 0
          %s146 = sshll.u32 %s1, 4
          %s147 = int_to_ptr.hbm [resolvable:$true] %s146
          %s148 = sshll.u32 [#allocation5], 4
          %s149 = int_to_ptr.vmem [resolvable:$true] %s148
          %154 = dma.hbm_to_vmem [thread:$0]  %s147, 2048, %s149, [#allocation6], 64, 64, 4
        $region16: #{tpu_custom_call.1} parent=11 // pred_fallthru
          _
        // Predicated region
        $region17: #{tpu_custom_call.1} parent=11 // pred_check
          %p155 = pneg %p98
        $region18: #{tpu_custom_call.1} parent=11 // pred_check_branch
          %157 = sbr.rel (%p155) target = $region20
        $region19: #{tpu_custom_call.1} parent=11 // pred_region
          %159 = vsyncadd [#allocation6], 0
          %s161 = sshll.u32 %s2, 4
          %s162 = int_to_ptr.hbm [resolvable:$true] %s161
          %s163 = sshll.u32 [#allocation7], 4
          %s164 = int_to_ptr.vmem [resolvable:$true] %s163
          %166 = dma.hbm_to_vmem [thread:$0]  %s162, 64, %s164, [#allocation6]
        $region20: #{tpu_custom_call.1} parent=11 // pred_fallthru
          _
      $region12: #{tpu_custom_call.1} parent=5 // pred_fallthru
        _
      %p167 = scmp.lt.s32.totalorder %s16, 2
      // Predicated region
      $region21: #{tpu_custom_call.1} parent=5 // pred_check
        %p168 = pneg %p167
      $region22: #{tpu_custom_call.1} parent=5 // pred_check_branch
        %170 = sbr.rel (%p168) target = $region24
      $region23: #{tpu_custom_call.1} parent=5 // pred_region
        // Predicated region
        $region25: #{tpu_custom_call.1} parent=23 // pred_check
          %p171 = pneg %p50
        $region26: #{tpu_custom_call.1} parent=23 // pred_check_branch
          %173 = sbr.rel (%p171) target = $region28
        $region27: #{tpu_custom_call.1} parent=23 // pred_region
          %s174 = sand.u32 %s40, 1
          %s175 = scalar_lea.sflag [#allocation3], %s174
          %s176 = sand.u32 %s40, 1
          %s177 = smul.addr %s176, 256
          %s178 = scalar_lea.vmem [#allocation2], %s177
          %s179 = smul.u32 32, %s23
          %181 = vsyncadd %s175, 0
          %s182 = smul.addr %s179, 2
          %s183 = smul.addr %s24, 64
          %s184 = sadd.s32 %s182, %s183
          %s185 = smul.addr %s184, 4
          %s186 = scalar_lea.hbm %s0, %s185
          %s187 = sshll.u32 %s186, 4
          %s188 = int_to_ptr.hbm [resolvable:$true] %s187
          %s189 = sshll.u32 %s178, 4
          %s190 = int_to_ptr.vmem [resolvable:$true] %s189
          %195 = dma.hbm_to_vmem [thread:$0]  %s188, 4096, %s190, %s175, 128, 128, 8
        $region28: #{tpu_custom_call.1} parent=23 // pred_fallthru
          _
      $region24: #{tpu_custom_call.1} parent=5 // pred_fallthru
        _
      %p196 = scmp.le.s32.totalorder 1, %s16
      %p197 = scmp.lt.s32.totalorder %s16, 3
      %p198 = pnand %p196, %p197
      %p199 = pneg %p198
      // Predicated region
      $region29: #{tpu_custom_call.1} parent=5 // pred_check
        _
      $region30: #{tpu_custom_call.1} parent=5 // pred_check_branch
        %201 = sbr.rel (%p198) target = $region32
      $region31: #{tpu_custom_call.1} parent=5 // pred_region
        %s202 = ssub.s32 %s16, 1
        %s203 = sand.u32 %s43, 1
        %s204 = scalar_lea.sflag [#allocation3], %s203
        %s205 = sand.u32 %s43, 1
        %s206 = smul.addr %s205, 256
        %s207 = scalar_lea.vmem [#allocation2], %s206
        // Predicated region
        $region33: #{tpu_custom_call.1} parent=31 // pred_check
          %p208 = pneg %p56
        $region34: #{tpu_custom_call.1} parent=31 // pred_check_branch
          %210 = sbr.rel (%p208) target = $region36
        $region35: #{tpu_custom_call.1} parent=31 // pred_region
          %212 = dma.done %s204, 4096
        $region36: #{tpu_custom_call.1} parent=31 // pred_fallthru
          _
        // Predicated region
        $region37: #{tpu_custom_call.1} parent=31 // pred_check
          %p213 = pneg %p77
        $region38: #{tpu_custom_call.1} parent=31 // pred_check_branch
          %215 = sbr.rel (%p213) target = $region40
        $region39: #{tpu_custom_call.1} parent=31 // pred_region
          %217 = dma.done [#allocation6], 2048
        $region40: #{tpu_custom_call.1} parent=31 // pred_fallthru
          _
        // Predicated region
        $region41: #{tpu_custom_call.1} parent=31 // pred_check
          %p218 = pneg %p98
        $region42: #{tpu_custom_call.1} parent=31 // pred_check_branch
          %220 = sbr.rel (%p218) target = $region44
        $region43: #{tpu_custom_call.1} parent=31 // pred_region
          %222 = dma.done [#allocation6], 64
        $region44: #{tpu_custom_call.1} parent=31 // pred_fallthru
          _
        %s223 = sand.u32 %s43, 1
        %s224 = scalar_lea.sflag [#allocation3], %s223
        %s225 = sand.u32 %s43, 1
        %s226 = smul.addr %s225, 256
        %s227 = scalar_lea.vmem [#allocation2], %s226
        %p228 = pneg %p56
        %p229 = pneg %p53
        %p230 = pneg %p77
        %p231 = pneg %p74
        %p232 = pneg %p98
        %p233 = pneg %p95
        %p234 = pneg %p126
        %p235 = pneg %p123
        %s236 = sand.u32 %s113, 1
        %s237 = scalar_lea.sflag [#allocation4], %s236
        %s238 = sand.u32 %s113, 1
        %s239 = smul.addr %s238, 128
        %s240 = scalar_lea.vmem [#allocation8], %s239
        %s241 = smul.u32 32, %s25
        %s242 = smul.u32 32, %s25
        %v243 = vld [vmem:[%s207] sm:$0xff]
        %v244 = vld [vmem:[%s207 + $0x8] sm:$0xff]
        %v245 = vld [vmem:[%s207 + $0x10] sm:$0xff]
        %v246 = vld [vmem:[%s207 + $0x18] sm:$0xff]
        %v247 = vld [vmem:[%s207 + $0x20] sm:$0xff]
        %v248 = vld [vmem:[%s207 + $0x28] sm:$0xff]
        %v249 = vld [vmem:[%s207 + $0x30] sm:$0xff]
        %v250 = vld [vmem:[%s207 + $0x38] sm:$0xff]
        %v251 = vld [vmem:[%s207 + $0x40] sm:$0xff]
        %v252 = vld [vmem:[%s207 + $0x48] sm:$0xff]
        %v253 = vld [vmem:[%s207 + $0x50] sm:$0xff]
        %v254 = vld [vmem:[%s207 + $0x58] sm:$0xff]
        %v255 = vld [vmem:[%s207 + $0x60] sm:$0xff]
        %v256 = vld [vmem:[%s207 + $0x68] sm:$0xff]
        %v257 = vld [vmem:[%s207 + $0x70] sm:$0xff]
        %v258 = vld [vmem:[%s207 + $0x78] sm:$0xff]
        %v259 = vld [vmem:[%s207 + $0x80] sm:$0xff]
        %v260 = vld [vmem:[%s207 + $0x88] sm:$0xff]
        %v261 = vld [vmem:[%s207 + $0x90] sm:$0xff]
        %v262 = vld [vmem:[%s207 + $0x98] sm:$0xff]
        %v263 = vld [vmem:[%s207 + $0xa0] sm:$0xff]
        %v264 = vld [vmem:[%s207 + $0xa8] sm:$0xff]
        %v265 = vld [vmem:[%s207 + $0xb0] sm:$0xff]
        %v266 = vld [vmem:[%s207 + $0xb8] sm:$0xff]
        %v267 = vld [vmem:[%s207 + $0xc0] sm:$0xff]
        %v268 = vld [vmem:[%s207 + $0xc8] sm:$0xff]
        %v269 = vld [vmem:[%s207 + $0xd0] sm:$0xff]
        %v270 = vld [vmem:[%s207 + $0xd8] sm:$0xff]
        %v271 = vld [vmem:[%s207 + $0xe0] sm:$0xff]
        %v272 = vld [vmem:[%s207 + $0xe8] sm:$0xff]
        %v273 = vld [vmem:[%s207 + $0xf0] sm:$0xff]
        %v274 = vld [vmem:[%s207 + $0xf8] sm:$0xff]
        %v275 = vld [vmem:[#allocation5] sm:$0xf]
        %v276 = vld [vmem:[#allocation5 + $0x4] sm:$0xf]
        %v277 = vld [vmem:[#allocation5 + $0x8] sm:$0xf]
        %v278 = vld [vmem:[#allocation5 + $0xc] sm:$0xf]
        %v279 = vld [vmem:[#allocation5 + $0x10] sm:$0xf]
        %v280 = vld [vmem:[#allocation5 + $0x14] sm:$0xf]
        %v281 = vld [vmem:[#allocation5 + $0x18] sm:$0xf]
        %v282 = vld [vmem:[#allocation5 + $0x1c] sm:$0xf]
        %v283 = vld [vmem:[#allocation5 + $0x20] sm:$0xf]
        %v284 = vld [vmem:[#allocation5 + $0x24] sm:$0xf]
        %v285 = vld [vmem:[#allocation5 + $0x28] sm:$0xf]
        %v286 = vld [vmem:[#allocation5 + $0x2c] sm:$0xf]
        %v287 = vld [vmem:[#allocation5 + $0x30] sm:$0xf]
        %v288 = vld [vmem:[#allocation5 + $0x34] sm:$0xf]
        %v289 = vld [vmem:[#allocation5 + $0x38] sm:$0xf]
        %v290 = vld [vmem:[#allocation5 + $0x3c] sm:$0xf]
        %v291 = vld [vmem:[#allocation5 + $0x40] sm:$0xf]
        %v292 = vld [vmem:[#allocation5 + $0x44] sm:$0xf]
        %v293 = vld [vmem:[#allocation5 + $0x48] sm:$0xf]
        %v294 = vld [vmem:[#allocation5 + $0x4c] sm:$0xf]
        %v295 = vld [vmem:[#allocation5 + $0x50] sm:$0xf]
        %v296 = vld [vmem:[#allocation5 + $0x54] sm:$0xf]
        %v297 = vld [vmem:[#allocation5 + $0x58] sm:$0xf]
        %v298 = vld [vmem:[#allocation5 + $0x5c] sm:$0xf]
        %v299 = vld [vmem:[#allocation5 + $0x60] sm:$0xf]
        %v300 = vld [vmem:[#allocation5 + $0x64] sm:$0xf]
        %v301 = vld [vmem:[#allocation5 + $0x68] sm:$0xf]
        %v302 = vld [vmem:[#allocation5 + $0x6c] sm:$0xf]
        %v303 = vld [vmem:[#allocation5 + $0x70] sm:$0xf]
        %v304 = vld [vmem:[#allocation5 + $0x74] sm:$0xf]
        %v305 = vld [vmem:[#allocation5 + $0x78] sm:$0xf]
        %v306 = vld [vmem:[#allocation5 + $0x7c] sm:$0xf]
        %v307 = vld [vmem:[#allocation7] sm:$0x7]
        %v308 = vperm.slane %v307, 0
        %v341 = vunpack.c.l.b16 %v243
        %v342 = vunpack.c.h.b16 %v243
        %v343 = vunpack.c.l.b16 %v244
        %v344 = vunpack.c.h.b16 %v244
        %v345 = vunpack.c.l.b16 %v245
        %v346 = vunpack.c.h.b16 %v245
        %v347 = vunpack.c.l.b16 %v246
        %v348 = vunpack.c.h.b16 %v246
        %v349 = vunpack.c.l.b16 %v247
        %v350 = vunpack.c.h.b16 %v247
        %v351 = vunpack.c.l.b16 %v248
        %v352 = vunpack.c.h.b16 %v248
        %v353 = vunpack.c.l.b16 %v249
        %v354 = vunpack.c.h.b16 %v249
        %v355 = vunpack.c.l.b16 %v250
        %v356 = vunpack.c.h.b16 %v250
        %v357 = vunpack.c.l.b16 %v251
        %v358 = vunpack.c.h.b16 %v251
        %v359 = vunpack.c.l.b16 %v252
        %v360 = vunpack.c.h.b16 %v252
        %v361 = vunpack.c.l.b16 %v253
        %v362 = vunpack.c.h.b16 %v253
        %v363 = vunpack.c.l.b16 %v254
        %v364 = vunpack.c.h.b16 %v254
        %v365 = vunpack.c.l.b16 %v255
        %v366 = vunpack.c.h.b16 %v255
        %v367 = vunpack.c.l.b16 %v256
        %v368 = vunpack.c.h.b16 %v256
        %v369 = vunpack.c.l.b16 %v257
        %v370 = vunpack.c.h.b16 %v257
        %v371 = vunpack.c.l.b16 %v258
        %v372 = vunpack.c.h.b16 %v258
        %v373 = vunpack.c.l.b16 %v259
        %v374 = vunpack.c.h.b16 %v259
        %v375 = vunpack.c.l.b16 %v260
        %v376 = vunpack.c.h.b16 %v260
        %v377 = vunpack.c.l.b16 %v261
        %v378 = vunpack.c.h.b16 %v261
        %v379 = vunpack.c.l.b16 %v262
        %v380 = vunpack.c.h.b16 %v262
        %v381 = vunpack.c.l.b16 %v263
        %v382 = vunpack.c.h.b16 %v263
        %v383 = vunpack.c.l.b16 %v264
        %v384 = vunpack.c.h.b16 %v264
        %v385 = vunpack.c.l.b16 %v265
        %v386 = vunpack.c.h.b16 %v265
        %v387 = vunpack.c.l.b16 %v266
        %v388 = vunpack.c.h.b16 %v266
        %v389 = vunpack.c.l.b16 %v267
        %v390 = vunpack.c.h.b16 %v267
        %v391 = vunpack.c.l.b16 %v268
        %v392 = vunpack.c.h.b16 %v268
        %v393 = vunpack.c.l.b16 %v269
        %v394 = vunpack.c.h.b16 %v269
        %v395 = vunpack.c.l.b16 %v270
        %v396 = vunpack.c.h.b16 %v270
        %v397 = vunpack.c.l.b16 %v271
        %v398 = vunpack.c.h.b16 %v271
        %v399 = vunpack.c.l.b16 %v272
        %v400 = vunpack.c.h.b16 %v272
        %v401 = vunpack.c.l.b16 %v273
        %v402 = vunpack.c.h.b16 %v273
        %v403 = vunpack.c.l.b16 %v274
        %v404 = vunpack.c.h.b16 %v274
        %v405 = vpack.c.b16 %v343, %v341
        %v406 = vpack.c.b16 %v344, %v342
        %v407 = vpack.c.b16 %v347, %v345
        %v408 = vpack.c.b16 %v348, %v346
        %v409 = vpack.c.b16 %v351, %v349
        %v410 = vpack.c.b16 %v352, %v350
        %v411 = vpack.c.b16 %v355, %v353
        %v412 = vpack.c.b16 %v356, %v354
        %v413 = vpack.c.b16 %v359, %v357
        %v414 = vpack.c.b16 %v360, %v358
        %v415 = vpack.c.b16 %v363, %v361
        %v416 = vpack.c.b16 %v364, %v362
        %v417 = vpack.c.b16 %v367, %v365
        %v418 = vpack.c.b16 %v368, %v366
        %v419 = vpack.c.b16 %v371, %v369
        %v420 = vpack.c.b16 %v372, %v370
        %v421 = vpack.c.b16 %v375, %v373
        %v422 = vpack.c.b16 %v376, %v374
        %v423 = vpack.c.b16 %v379, %v377
        %v424 = vpack.c.b16 %v380, %v378
        %v425 = vpack.c.b16 %v383, %v381
        %v426 = vpack.c.b16 %v384, %v382
        %v427 = vpack.c.b16 %v387, %v385
        %v428 = vpack.c.b16 %v388, %v386
        %v429 = vpack.c.b16 %v391, %v389
        %v430 = vpack.c.b16 %v392, %v390
        %v431 = vpack.c.b16 %v395, %v393
        %v432 = vpack.c.b16 %v396, %v394
        %v433 = vpack.c.b16 %v399, %v397
        %v434 = vpack.c.b16 %v400, %v398
        %v435 = vpack.c.b16 %v403, %v401
        %v436 = vpack.c.b16 %v404, %v402
        %v501 = vunpack.c.l.b16 %v275
        %v502 = vunpack.c.l.b16 %v276
        %v503 = vunpack.c.l.b16 %v277
        %v504 = vunpack.c.l.b16 %v278
        %v505 = vunpack.c.l.b16 %v279
        %v506 = vunpack.c.l.b16 %v280
        %v507 = vunpack.c.l.b16 %v281
        %v508 = vunpack.c.l.b16 %v282
        %v509 = vunpack.c.l.b16 %v283
        %v510 = vunpack.c.l.b16 %v284
        %v511 = vunpack.c.l.b16 %v285
        %v512 = vunpack.c.l.b16 %v286
        %v513 = vunpack.c.l.b16 %v287
        %v514 = vunpack.c.l.b16 %v288
        %v515 = vunpack.c.l.b16 %v289
        %v516 = vunpack.c.l.b16 %v290
        %v517 = vunpack.c.l.b16 %v291
        %v518 = vunpack.c.l.b16 %v292
        %v519 = vunpack.c.l.b16 %v293
        %v520 = vunpack.c.l.b16 %v294
        %v521 = vunpack.c.l.b16 %v295
        %v522 = vunpack.c.l.b16 %v296
        %v523 = vunpack.c.l.b16 %v297
        %v524 = vunpack.c.l.b16 %v298
        %v525 = vunpack.c.l.b16 %v299
        %v526 = vunpack.c.l.b16 %v300
        %v527 = vunpack.c.l.b16 %v301
        %v528 = vunpack.c.l.b16 %v302
        %v529 = vunpack.c.l.b16 %v303
        %v530 = vunpack.c.l.b16 %v304
        %v531 = vunpack.c.l.b16 %v305
        %v532 = vunpack.c.l.b16 %v306
        %v533 = vpack.c.b16 %v502, %v501
        %v534 = vpack.c.b16 %v504, %v503
        %v535 = vpack.c.b16 %v506, %v505
        %v536 = vpack.c.b16 %v508, %v507
        %v537 = vpack.c.b16 %v510, %v509
        %v538 = vpack.c.b16 %v512, %v511
        %v539 = vpack.c.b16 %v514, %v513
        %v540 = vpack.c.b16 %v516, %v515
        %v541 = vpack.c.b16 %v518, %v517
        %v542 = vpack.c.b16 %v520, %v519
        %v543 = vpack.c.b16 %v522, %v521
        %v544 = vpack.c.b16 %v524, %v523
        %v545 = vpack.c.b16 %v526, %v525
        %v546 = vpack.c.b16 %v528, %v527
        %v547 = vpack.c.b16 %v530, %v529
        %v548 = vpack.c.b16 %v532, %v531
        %565 = vmatpush.bf16.msra.mxu0 %v540
        %566 = vmatpush.bf16.msra.mxu0 %v539
        %567 = vmatpush.bf16.msra.mxu0 %v538
        %568 = vmatpush.bf16.msra.mxu0 %v537
        %569 = vmatpush.bf16.msra.mxu0 %v536
        %570 = vmatpush.bf16.msra.mxu0 %v535
        %571 = vmatpush.bf16.msra.mxu0 %v534
        %572 = vmatpush.bf16.msra.mxu0 %v533
        %573 = vmatmul.bf16.gmra.mxu0 %v405
        %v574 = vpop.f32.mrf.mxu0
        %v575 = vadd.f32 %v308, %v574
        %v576 = vpop.f32.mrf.mxu0
        %v577 = vadd.f32 %v308, %v576
        %578 = vmatmul.bf16.gmra.mxu0 %v407
        %v579 = vpop.f32.mrf.mxu0
        %v580 = vadd.f32 %v308, %v579
        %v581 = vpop.f32.mrf.mxu0
        %v582 = vadd.f32 %v308, %v581
        %583 = vmatmul.bf16.gmra.mxu0 %v409
        %v584 = vpop.f32.mrf.mxu0
        %v585 = vadd.f32 %v308, %v584
        %v586 = vpop.f32.mrf.mxu0
        %v587 = vadd.f32 %v308, %v586
        %588 = vmatmul.bf16.gmra.mxu0 %v411
        %v589 = vpop.f32.mrf.mxu0
        %v590 = vadd.f32 %v308, %v589
        %v591 = vpop.f32.mrf.mxu0
        %v592 = vadd.f32 %v308, %v591
        %593 = vmatmul.bf16.gmra.mxu0 %v413
        %v594 = vpop.f32.mrf.mxu0
        %v595 = vadd.f32 %v308, %v594
        %v596 = vpop.f32.mrf.mxu0
        %v597 = vadd.f32 %v308, %v596
        %598 = vmatmul.bf16.gmra.mxu0 %v415
        %v599 = vpop.f32.mrf.mxu0
        %v600 = vadd.f32 %v308, %v599
        %v601 = vpop.f32.mrf.mxu0
        %v602 = vadd.f32 %v308, %v601
        %603 = vmatmul.bf16.gmra.mxu0 %v417
        %v604 = vpop.f32.mrf.mxu0
        %v605 = vadd.f32 %v308, %v604
        %v606 = vpop.f32.mrf.mxu0
        %v607 = vadd.f32 %v308, %v606
        %608 = vmatmul.bf16.gmra.mxu0 %v419
        %v609 = vpop.f32.mrf.mxu0
        %v610 = vadd.f32 %v308, %v609
        %v611 = vpop.f32.mrf.mxu0
        %v612 = vadd.f32 %v308, %v611
        %613 = vmatmul.bf16.gmra.mxu0 %v421
        %v614 = vpop.f32.mrf.mxu0
        %v615 = vadd.f32 %v308, %v614
        %v616 = vpop.f32.mrf.mxu0
        %v617 = vadd.f32 %v308, %v616
        %618 = vmatmul.bf16.gmra.mxu0 %v423
        %v619 = vpop.f32.mrf.mxu0
        %v620 = vadd.f32 %v308, %v619
        %v621 = vpop.f32.mrf.mxu0
        %v622 = vadd.f32 %v308, %v621
        %623 = vmatmul.bf16.gmra.mxu0 %v425
        %v624 = vpop.f32.mrf.mxu0
        %v625 = vadd.f32 %v308, %v624
        %v626 = vpop.f32.mrf.mxu0
        %v627 = vadd.f32 %v308, %v626
        %628 = vmatmul.bf16.gmra.mxu0 %v427
        %v629 = vpop.f32.mrf.mxu0
        %v630 = vadd.f32 %v308, %v629
        %v631 = vpop.f32.mrf.mxu0
        %v632 = vadd.f32 %v308, %v631
        %633 = vmatmul.bf16.gmra.mxu0 %v429
        %v634 = vpop.f32.mrf.mxu0
        %v635 = vadd.f32 %v308, %v634
        %v636 = vpop.f32.mrf.mxu0
        %v637 = vadd.f32 %v308, %v636
        %638 = vmatmul.bf16.gmra.mxu0 %v431
        %v639 = vpop.f32.mrf.mxu0
        %v640 = vadd.f32 %v308, %v639
        %v641 = vpop.f32.mrf.mxu0
        %v642 = vadd.f32 %v308, %v641
        %643 = vmatmul.bf16.gmra.mxu0 %v433
        %v644 = vpop.f32.mrf.mxu0
        %v645 = vadd.f32 %v308, %v644
        %v646 = vpop.f32.mrf.mxu0
        %v647 = vadd.f32 %v308, %v646
        %648 = vmatmul.bf16.gmra.mxu0 %v435
        %v649 = vpop.f32.mrf.mxu0
        %v650 = vadd.f32 %v308, %v649
        %v651 = vpop.f32.mrf.mxu0
        %v652 = vadd.f32 %v308, %v651
        %653 = vdwg.mxu0
        %654 = vmatpush.bf16.msra.mxu0 %v548
        %655 = vmatpush.bf16.msra.mxu0 %v547
        %656 = vmatpush.bf16.msra.mxu0 %v546
        %657 = vmatpush.bf16.msra.mxu0 %v545
        %658 = vmatpush.bf16.msra.mxu0 %v544
        %659 = vmatpush.bf16.msra.mxu0 %v543
        %660 = vmatpush.bf16.msra.mxu0 %v542
        %661 = vmatpush.bf16.msra.mxu0 %v541
        %662 = vmatmul.bf16.gmra.mxu0 %v406
        %v663 = vpop.f32.mrf.mxu0
        %v664 = vadd.f32 %v575, %v663
        %v665 = vpop.f32.mrf.mxu0
        %v666 = vadd.f32 %v577, %v665
        %667 = vmatmul.bf16.gmra.mxu0 %v408
        %v668 = vpop.f32.mrf.mxu0
        %v669 = vadd.f32 %v580, %v668
        %v670 = vpop.f32.mrf.mxu0
        %v671 = vadd.f32 %v582, %v670
        %672 = vmatmul.bf16.gmra.mxu0 %v410
        %v673 = vpop.f32.mrf.mxu0
        %v674 = vadd.f32 %v585, %v673
        %v675 = vpop.f32.mrf.mxu0
        %v676 = vadd.f32 %v587, %v675
        %677 = vmatmul.bf16.gmra.mxu0 %v412
        %v678 = vpop.f32.mrf.mxu0
        %v679 = vadd.f32 %v590, %v678
        %v680 = vpop.f32.mrf.mxu0
        %v681 = vadd.f32 %v592, %v680
        %682 = vmatmul.bf16.gmra.mxu0 %v414
        %v683 = vpop.f32.mrf.mxu0
        %v684 = vadd.f32 %v595, %v683
        %v685 = vpop.f32.mrf.mxu0
        %v686 = vadd.f32 %v597, %v685
        %687 = vmatmul.bf16.gmra.mxu0 %v416
        %v688 = vpop.f32.mrf.mxu0
        %v689 = vadd.f32 %v600, %v688
        %v690 = vpop.f32.mrf.mxu0
        %v691 = vadd.f32 %v602, %v690
        %692 = vmatmul.bf16.gmra.mxu0 %v418
        %v693 = vpop.f32.mrf.mxu0
        %v694 = vadd.f32 %v605, %v693
        %v695 = vpop.f32.mrf.mxu0
        %v696 = vadd.f32 %v607, %v695
        %697 = vmatmul.bf16.gmra.mxu0 %v420
        %v698 = vpop.f32.mrf.mxu0
        %v699 = vadd.f32 %v610, %v698
        %v700 = vpop.f32.mrf.mxu0
        %v701 = vadd.f32 %v612, %v700
        %702 = vmatmul.bf16.gmra.mxu0 %v422
        %v703 = vpop.f32.mrf.mxu0
        %v704 = vadd.f32 %v615, %v703
        %v705 = vpop.f32.mrf.mxu0
        %v706 = vadd.f32 %v617, %v705
        %707 = vmatmul.bf16.gmra.mxu0 %v424
        %v708 = vpop.f32.mrf.mxu0
        %v709 = vadd.f32 %v620, %v708
        %v710 = vpop.f32.mrf.mxu0
        %v711 = vadd.f32 %v622, %v710
        %712 = vmatmul.bf16.gmra.mxu0 %v426
        %v713 = vpop.f32.mrf.mxu0
        %v714 = vadd.f32 %v625, %v713
        %v715 = vpop.f32.mrf.mxu0
        %v716 = vadd.f32 %v627, %v715
        %717 = vmatmul.bf16.gmra.mxu0 %v428
        %v718 = vpop.f32.mrf.mxu0
        %v719 = vadd.f32 %v630, %v718
        %v720 = vpop.f32.mrf.mxu0
        %v721 = vadd.f32 %v632, %v720
        %722 = vmatmul.bf16.gmra.mxu0 %v430
        %v723 = vpop.f32.mrf.mxu0
        %v724 = vadd.f32 %v635, %v723
        %v725 = vpop.f32.mrf.mxu0
        %v726 = vadd.f32 %v637, %v725
        %727 = vmatmul.bf16.gmra.mxu0 %v432
        %v728 = vpop.f32.mrf.mxu0
        %v729 = vadd.f32 %v640, %v728
        %v730 = vpop.f32.mrf.mxu0
        %v731 = vadd.f32 %v642, %v730
        %732 = vmatmul.bf16.gmra.mxu0 %v434
        %v733 = vpop.f32.mrf.mxu0
        %v734 = vadd.f32 %v645, %v733
        %v735 = vpop.f32.mrf.mxu0
        %v736 = vadd.f32 %v647, %v735
        %737 = vmatmul.bf16.gmra.mxu0 %v436
        %v738 = vpop.f32.mrf.mxu0
        %v739 = vadd.f32 %v650, %v738
        %v740 = vpop.f32.mrf.mxu0
        %v741 = vadd.f32 %v652, %v740
        %742 = vdwg.mxu0
        %743 = vadd.xlane.f32.xlu0 %v664
        %v744 = vpop.xlane.xlu0 %743
        %745 = vadd.xlane.f32.xlu0 %v666
        %v746 = vpop.xlane.xlu0 %745
        %747 = vadd.xlane.f32.xlu0 %v669
        %v748 = vpop.xlane.xlu0 %747
        %749 = vadd.xlane.f32.xlu0 %v671
        %v750 = vpop.xlane.xlu0 %749
        %751 = vadd.xlane.f32.xlu0 %v674
        %v752 = vpop.xlane.xlu0 %751
        %753 = vadd.xlane.f32.xlu0 %v676
        %v754 = vpop.xlane.xlu0 %753
        %755 = vadd.xlane.f32.xlu0 %v679
        %v756 = vpop.xlane.xlu0 %755
        %757 = vadd.xlane.f32.xlu0 %v681
        %v758 = vpop.xlane.xlu0 %757
        %759 = vadd.xlane.f32.xlu0 %v684
        %v760 = vpop.xlane.xlu0 %759
        %761 = vadd.xlane.f32.xlu0 %v686
        %v762 = vpop.xlane.xlu0 %761
        %763 = vadd.xlane.f32.xlu0 %v689
        %v764 = vpop.xlane.xlu0 %763
        %765 = vadd.xlane.f32.xlu0 %v691
        %v766 = vpop.xlane.xlu0 %765
        %767 = vadd.xlane.f32.xlu0 %v694
        %v768 = vpop.xlane.xlu0 %767
        %769 = vadd.xlane.f32.xlu0 %v696
        %v770 = vpop.xlane.xlu0 %769
        %771 = vadd.xlane.f32.xlu0 %v699
        %v772 = vpop.xlane.xlu0 %771
        %773 = vadd.xlane.f32.xlu0 %v701
        %v774 = vpop.xlane.xlu0 %773
        %775 = vadd.xlane.f32.xlu0 %v704
        %v776 = vpop.xlane.xlu0 %775
        %777 = vadd.xlane.f32.xlu0 %v706
        %v778 = vpop.xlane.xlu0 %777
        %779 = vadd.xlane.f32.xlu0 %v709
        %v780 = vpop.xlane.xlu0 %779
        %781 = vadd.xlane.f32.xlu0 %v711
        %v782 = vpop.xlane.xlu0 %781
        %783 = vadd.xlane.f32.xlu0 %v714
        %v784 = vpop.xlane.xlu0 %783
        %785 = vadd.xlane.f32.xlu0 %v716
        %v786 = vpop.xlane.xlu0 %785
        %787 = vadd.xlane.f32.xlu0 %v719
        %v788 = vpop.xlane.xlu0 %787
        %789 = vadd.xlane.f32.xlu0 %v721
        %v790 = vpop.xlane.xlu0 %789
        %791 = vadd.xlane.f32.xlu0 %v724
        %v792 = vpop.xlane.xlu0 %791
        %793 = vadd.xlane.f32.xlu0 %v726
        %v794 = vpop.xlane.xlu0 %793
        %795 = vadd.xlane.f32.xlu0 %v729
        %v796 = vpop.xlane.xlu0 %795
        %797 = vadd.xlane.f32.xlu0 %v731
        %v798 = vpop.xlane.xlu0 %797
        %799 = vadd.xlane.f32.xlu0 %v734
        %v800 = vpop.xlane.xlu0 %799
        %801 = vadd.xlane.f32.xlu0 %v736
        %v802 = vpop.xlane.xlu0 %801
        %803 = vadd.xlane.f32.xlu0 %v739
        %v804 = vpop.xlane.xlu0 %803
        %805 = vadd.xlane.f32.xlu0 %v741
        %v806 = vpop.xlane.xlu0 %805
        %v807 = vrcp.pop 128.0
        %v808 = vmul.f32 128.0, %v807
        %v809 = vsub.f32 1.0, %v808
        %v810 = vmul.f32 %v807, %v809
        %v811 = vadd.f32 %v807, %v810
        %vm812 = vweird.f32 %v807
        %v813 = vsel %vm812, %v807, %v811
        %v814 = vmul.f32 %v744, %v813
        %v815 = vmul.f32 %v746, %v813
        %v816 = vmul.f32 %v748, %v813
        %v817 = vmul.f32 %v750, %v813
        %v818 = vmul.f32 %v752, %v813
        %v819 = vmul.f32 %v754, %v813
        %v820 = vmul.f32 %v756, %v813
        %v821 = vmul.f32 %v758, %v813
        %v822 = vmul.f32 %v760, %v813
        %v823 = vmul.f32 %v762, %v813
        %v824 = vmul.f32 %v764, %v813
        %v825 = vmul.f32 %v766, %v813
        %v826 = vmul.f32 %v768, %v813
        %v827 = vmul.f32 %v770, %v813
        %v828 = vmul.f32 %v772, %v813
        %v829 = vmul.f32 %v774, %v813
        %v830 = vmul.f32 %v776, %v813
        %v831 = vmul.f32 %v778, %v813
        %v832 = vmul.f32 %v780, %v813
        %v833 = vmul.f32 %v782, %v813
        %v834 = vmul.f32 %v784, %v813
        %v835 = vmul.f32 %v786, %v813
        %v836 = vmul.f32 %v788, %v813
        %v837 = vmul.f32 %v790, %v813
        %v838 = vmul.f32 %v792, %v813
        %v839 = vmul.f32 %v794, %v813
        %v840 = vmul.f32 %v796, %v813
        %v841 = vmul.f32 %v798, %v813
        %v842 = vmul.f32 %v800, %v813
        %v843 = vmul.f32 %v802, %v813
        %v844 = vmul.f32 %v804, %v813
        %v845 = vmul.f32 %v806, %v813
        %v846 = vsub.f32 %v664, %v814
        %v847 = vsub.f32 %v666, %v815
        %v848 = vsub.f32 %v669, %v816
        %v849 = vsub.f32 %v671, %v817
        %v850 = vsub.f32 %v674, %v818
        %v851 = vsub.f32 %v676, %v819
        %v852 = vsub.f32 %v679, %v820
        %v853 = vsub.f32 %v681, %v821
        %v854 = vsub.f32 %v684, %v822
        %v855 = vsub.f32 %v686, %v823
        %v856 = vsub.f32 %v689, %v824
        %v857 = vsub.f32 %v691, %v825
        %v858 = vsub.f32 %v694, %v826
        %v859 = vsub.f32 %v696, %v827
        %v860 = vsub.f32 %v699, %v828
        %v861 = vsub.f32 %v701, %v829
        %v862 = vsub.f32 %v704, %v830
        %v863 = vsub.f32 %v706, %v831
        %v864 = vsub.f32 %v709, %v832
        %v865 = vsub.f32 %v711, %v833
        %v866 = vsub.f32 %v714, %v834
        %v867 = vsub.f32 %v716, %v835
        %v868 = vsub.f32 %v719, %v836
        %v869 = vsub.f32 %v721, %v837
        %v870 = vsub.f32 %v724, %v838
        %v871 = vsub.f32 %v726, %v839
        %v872 = vsub.f32 %v729, %v840
        %v873 = vsub.f32 %v731, %v841
        %v874 = vsub.f32 %v734, %v842
        %v875 = vsub.f32 %v736, %v843
        %v876 = vsub.f32 %v739, %v844
        %v877 = vsub.f32 %v741, %v845
        %v878 = vmul.f32 %v846, %v846
        %v879 = vmul.f32 %v847, %v847
        %v880 = vmul.f32 %v848, %v848
        %v881 = vmul.f32 %v849, %v849
        %v882 = vmul.f32 %v850, %v850
        %v883 = vmul.f32 %v851, %v851
        %v884 = vmul.f32 %v852, %v852
        %v885 = vmul.f32 %v853, %v853
        %v886 = vmul.f32 %v854, %v854
        %v887 = vmul.f32 %v855, %v855
        %v888 = vmul.f32 %v856, %v856
        %v889 = vmul.f32 %v857, %v857
        %v890 = vmul.f32 %v858, %v858
        %v891 = vmul.f32 %v859, %v859
        %v892 = vmul.f32 %v860, %v860
        %v893 = vmul.f32 %v861, %v861
        %v894 = vmul.f32 %v862, %v862
        %v895 = vmul.f32 %v863, %v863
        %v896 = vmul.f32 %v864, %v864
        %v897 = vmul.f32 %v865, %v865
        %v898 = vmul.f32 %v866, %v866
        %v899 = vmul.f32 %v867, %v867
        %v900 = vmul.f32 %v868, %v868
        %v901 = vmul.f32 %v869, %v869
        %v902 = vmul.f32 %v870, %v870
        %v903 = vmul.f32 %v871, %v871
        %v904 = vmul.f32 %v872, %v872
        %v905 = vmul.f32 %v873, %v873
        %v906 = vmul.f32 %v874, %v874
        %v907 = vmul.f32 %v875, %v875
        %v908 = vmul.f32 %v876, %v876
        %v909 = vmul.f32 %v877, %v877
        %910 = vadd.xlane.f32.xlu0 %v878
        %v911 = vpop.xlane.xlu0 %910
        %912 = vadd.xlane.f32.xlu0 %v879
        %v913 = vpop.xlane.xlu0 %912
        %914 = vadd.xlane.f32.xlu0 %v880
        %v915 = vpop.xlane.xlu0 %914
        %916 = vadd.xlane.f32.xlu0 %v881
        %v917 = vpop.xlane.xlu0 %916
        %918 = vadd.xlane.f32.xlu0 %v882
        %v919 = vpop.xlane.xlu0 %918
        %920 = vadd.xlane.f32.xlu0 %v883
        %v921 = vpop.xlane.xlu0 %920
        %922 = vadd.xlane.f32.xlu0 %v884
        %v923 = vpop.xlane.xlu0 %922
        %924 = vadd.xlane.f32.xlu0 %v885
        %v925 = vpop.xlane.xlu0 %924
        %926 = vadd.xlane.f32.xlu0 %v886
        %v927 = vpop.xlane.xlu0 %926
        %928 = vadd.xlane.f32.xlu0 %v887
        %v929 = vpop.xlane.xlu0 %928
        %930 = vadd.xlane.f32.xlu0 %v888
        %v931 = vpop.xlane.xlu0 %930
        %932 = vadd.xlane.f32.xlu0 %v889
        %v933 = vpop.xlane.xlu0 %932
        %934 = vadd.xlane.f32.xlu0 %v890
        %v935 = vpop.xlane.xlu0 %934
        %936 = vadd.xlane.f32.xlu0 %v891
        %v937 = vpop.xlane.xlu0 %936
        %938 = vadd.xlane.f32.xlu0 %v892
        %v939 = vpop.xlane.xlu0 %938
        %940 = vadd.xlane.f32.xlu0 %v893
        %v941 = vpop.xlane.xlu0 %940
        %942 = vadd.xlane.f32.xlu0 %v894
        %v943 = vpop.xlane.xlu0 %942
        %944 = vadd.xlane.f32.xlu0 %v895
        %v945 = vpop.xlane.xlu0 %944
        %946 = vadd.xlane.f32.xlu0 %v896
        %v947 = vpop.xlane.xlu0 %946
        %948 = vadd.xlane.f32.xlu0 %v897
        %v949 = vpop.xlane.xlu0 %948
        %950 = vadd.xlane.f32.xlu0 %v898
        %v951 = vpop.xlane.xlu0 %950
        %952 = vadd.xlane.f32.xlu0 %v899
        %v953 = vpop.xlane.xlu0 %952
        %954 = vadd.xlane.f32.xlu0 %v900
        %v955 = vpop.xlane.xlu0 %954
        %956 = vadd.xlane.f32.xlu0 %v901
        %v957 = vpop.xlane.xlu0 %956
        %958 = vadd.xlane.f32.xlu0 %v902
        %v959 = vpop.xlane.xlu0 %958
        %960 = vadd.xlane.f32.xlu0 %v903
        %v961 = vpop.xlane.xlu0 %960
        %962 = vadd.xlane.f32.xlu0 %v904
        %v963 = vpop.xlane.xlu0 %962
        %964 = vadd.xlane.f32.xlu0 %v905
        %v965 = vpop.xlane.xlu0 %964
        %966 = vadd.xlane.f32.xlu0 %v906
        %v967 = vpop.xlane.xlu0 %966
        %968 = vadd.xlane.f32.xlu0 %v907
        %v969 = vpop.xlane.xlu0 %968
        %970 = vadd.xlane.f32.xlu0 %v908
        %v971 = vpop.xlane.xlu0 %970
        %972 = vadd.xlane.f32.xlu0 %v909
        %v973 = vpop.xlane.xlu0 %972
        %v974 = vmul.f32 %v911, %v813
        %v975 = vmul.f32 %v913, %v813
        %v976 = vmul.f32 %v915, %v813
        %v977 = vmul.f32 %v917, %v813
        %v978 = vmul.f32 %v919, %v813
        %v979 = vmul.f32 %v921, %v813
        %v980 = vmul.f32 %v923, %v813
        %v981 = vmul.f32 %v925, %v813
        %v982 = vmul.f32 %v927, %v813
        %v983 = vmul.f32 %v929, %v813
        %v984 = vmul.f32 %v931, %v813
        %v985 = vmul.f32 %v933, %v813
        %v986 = vmul.f32 %v935, %v813
        %v987 = vmul.f32 %v937, %v813
        %v988 = vmul.f32 %v939, %v813
        %v989 = vmul.f32 %v941, %v813
        %v990 = vmul.f32 %v943, %v813
        %v991 = vmul.f32 %v945, %v813
        %v992 = vmul.f32 %v947, %v813
        %v993 = vmul.f32 %v949, %v813
        %v994 = vmul.f32 %v951, %v813
        %v995 = vmul.f32 %v953, %v813
        %v996 = vmul.f32 %v955, %v813
        %v997 = vmul.f32 %v957, %v813
        %v998 = vmul.f32 %v959, %v813
        %v999 = vmul.f32 %v961, %v813
        %v1000 = vmul.f32 %v963, %v813
        %v1001 = vmul.f32 %v965, %v813
        %v1002 = vmul.f32 %v967, %v813
        %v1003 = vmul.f32 %v969, %v813
        %v1004 = vmul.f32 %v971, %v813
        %v1005 = vmul.f32 %v973, %v813
        %v1006 = vadd.f32 %v974, 1e-05
        %v1007 = vadd.f32 %v975, 1e-05
        %v1008 = vadd.f32 %v976, 1e-05
        %v1009 = vadd.f32 %v977, 1e-05
        %v1010 = vadd.f32 %v978, 1e-05
        %v1011 = vadd.f32 %v979, 1e-05
        %v1012 = vadd.f32 %v980, 1e-05
        %v1013 = vadd.f32 %v981, 1e-05
        %v1014 = vadd.f32 %v982, 1e-05
        %v1015 = vadd.f32 %v983, 1e-05
        %v1016 = vadd.f32 %v984, 1e-05
        %v1017 = vadd.f32 %v985, 1e-05
        %v1018 = vadd.f32 %v986, 1e-05
        %v1019 = vadd.f32 %v987, 1e-05
        %v1020 = vadd.f32 %v988, 1e-05
        %v1021 = vadd.f32 %v989, 1e-05
        %v1022 = vadd.f32 %v990, 1e-05
        %v1023 = vadd.f32 %v991, 1e-05
        %v1024 = vadd.f32 %v992, 1e-05
        %v1025 = vadd.f32 %v993, 1e-05
        %v1026 = vadd.f32 %v994, 1e-05
        %v1027 = vadd.f32 %v995, 1e-05
        %v1028 = vadd.f32 %v996, 1e-05
        %v1029 = vadd.f32 %v997, 1e-05
        %v1030 = vadd.f32 %v998, 1e-05
        %v1031 = vadd.f32 %v999, 1e-05
        %v1032 = vadd.f32 %v1000, 1e-05
        %v1033 = vadd.f32 %v1001, 1e-05
        %v1034 = vadd.f32 %v1002, 1e-05
        %v1035 = vadd.f32 %v1003, 1e-05
        %v1036 = vadd.f32 %v1004, 1e-05
        %v1037 = vadd.f32 %v1005, 1e-05
        %v1038 = vrsqrt.pop %v1006
        %v1039 = vmul.f32 %v1038, %v1006
        %v1040 = vmul.f32 %v1039, %v1038
        %v1041 = vmul.f32 0.5, %v1040
        %v1042 = vsub.f32 1.5, %v1041
        %v1043 = vmul.f32 %v1038, %v1042
        %vm1044 = vweird.f32 %v1006
        %vm1045 = vweird.f32 %v1038
        %vm1046 = vmor %vm1044, %vm1045
        %v1047 = vsel %vm1046, %v1038, %v1043
        %v1048 = vrsqrt.pop %v1007
        %v1049 = vmul.f32 %v1048, %v1007
        %v1050 = vmul.f32 %v1049, %v1048
        %v1051 = vmul.f32 0.5, %v1050
        %v1052 = vsub.f32 1.5, %v1051
        %v1053 = vmul.f32 %v1048, %v1052
        %vm1054 = vweird.f32 %v1007
        %vm1055 = vweird.f32 %v1048
        %vm1056 = vmor %vm1054, %vm1055
        %v1057 = vsel %vm1056, %v1048, %v1053
        %v1058 = vrsqrt.pop %v1008
        %v1059 = vmul.f32 %v1058, %v1008
        %v1060 = vmul.f32 %v1059, %v1058
        %v1061 = vmul.f32 0.5, %v1060
        %v1062 = vsub.f32 1.5, %v1061
        %v1063 = vmul.f32 %v1058, %v1062
        %vm1064 = vweird.f32 %v1008
        %vm1065 = vweird.f32 %v1058
        %vm1066 = vmor %vm1064, %vm1065
        %v1067 = vsel %vm1066, %v1058, %v1063
        %v1068 = vrsqrt.pop %v1009
        %v1069 = vmul.f32 %v1068, %v1009
        %v1070 = vmul.f32 %v1069, %v1068
        %v1071 = vmul.f32 0.5, %v1070
        %v1072 = vsub.f32 1.5, %v1071
        %v1073 = vmul.f32 %v1068, %v1072
        %vm1074 = vweird.f32 %v1009
        %vm1075 = vweird.f32 %v1068
        %vm1076 = vmor %vm1074, %vm1075
        %v1077 = vsel %vm1076, %v1068, %v1073
        %v1078 = vrsqrt.pop %v1010
        %v1079 = vmul.f32 %v1078, %v1010
        %v1080 = vmul.f32 %v1079, %v1078
        %v1081 = vmul.f32 0.5, %v1080
        %v1082 = vsub.f32 1.5, %v1081
        %v1083 = vmul.f32 %v1078, %v1082
        %vm1084 = vweird.f32 %v1010
        %vm1085 = vweird.f32 %v1078
        %vm1086 = vmor %vm1084, %vm1085
        %v1087 = vsel %vm1086, %v1078, %v1083
        %v1088 = vrsqrt.pop %v1011
        %v1089 = vmul.f32 %v1088, %v1011
        %v1090 = vmul.f32 %v1089, %v1088
        %v1091 = vmul.f32 0.5, %v1090
        %v1092 = vsub.f32 1.5, %v1091
        %v1093 = vmul.f32 %v1088, %v1092
        %vm1094 = vweird.f32 %v1011
        %vm1095 = vweird.f32 %v1088
        %vm1096 = vmor %vm1094, %vm1095
        %v1097 = vsel %vm1096, %v1088, %v1093
        %v1098 = vrsqrt.pop %v1012
        %v1099 = vmul.f32 %v1098, %v1012
        %v1100 = vmul.f32 %v1099, %v1098
        %v1101 = vmul.f32 0.5, %v1100
        %v1102 = vsub.f32 1.5, %v1101
        %v1103 = vmul.f32 %v1098, %v1102
        %vm1104 = vweird.f32 %v1012
        %vm1105 = vweird.f32 %v1098
        %vm1106 = vmor %vm1104, %vm1105
        %v1107 = vsel %vm1106, %v1098, %v1103
        %v1108 = vrsqrt.pop %v1013
        %v1109 = vmul.f32 %v1108, %v1013
        %v1110 = vmul.f32 %v1109, %v1108
        %v1111 = vmul.f32 0.5, %v1110
        %v1112 = vsub.f32 1.5, %v1111
        %v1113 = vmul.f32 %v1108, %v1112
        %vm1114 = vweird.f32 %v1013
        %vm1115 = vweird.f32 %v1108
        %vm1116 = vmor %vm1114, %vm1115
        %v1117 = vsel %vm1116, %v1108, %v1113
        %v1118 = vrsqrt.pop %v1014
        %v1119 = vmul.f32 %v1118, %v1014
        %v1120 = vmul.f32 %v1119, %v1118
        %v1121 = vmul.f32 0.5, %v1120
        %v1122 = vsub.f32 1.5, %v1121
        %v1123 = vmul.f32 %v1118, %v1122
        %vm1124 = vweird.f32 %v1014
        %vm1125 = vweird.f32 %v1118
        %vm1126 = vmor %vm1124, %vm1125
        %v1127 = vsel %vm1126, %v1118, %v1123
        %v1128 = vrsqrt.pop %v1015
        %v1129 = vmul.f32 %v1128, %v1015
        %v1130 = vmul.f32 %v1129, %v1128
        %v1131 = vmul.f32 0.5, %v1130
        %v1132 = vsub.f32 1.5, %v1131
        %v1133 = vmul.f32 %v1128, %v1132
        %vm1134 = vweird.f32 %v1015
        %vm1135 = vweird.f32 %v1128
        %vm1136 = vmor %vm1134, %vm1135
        %v1137 = vsel %vm1136, %v1128, %v1133
        %v1138 = vrsqrt.pop %v1016
        %v1139 = vmul.f32 %v1138, %v1016
        %v1140 = vmul.f32 %v1139, %v1138
        %v1141 = vmul.f32 0.5, %v1140
        %v1142 = vsub.f32 1.5, %v1141
        %v1143 = vmul.f32 %v1138, %v1142
        %vm1144 = vweird.f32 %v1016
        %vm1145 = vweird.f32 %v1138
        %vm1146 = vmor %vm1144, %vm1145
        %v1147 = vsel %vm1146, %v1138, %v1143
        %v1148 = vrsqrt.pop %v1017
        %v1149 = vmul.f32 %v1148, %v1017
        %v1150 = vmul.f32 %v1149, %v1148
        %v1151 = vmul.f32 0.5, %v1150
        %v1152 = vsub.f32 1.5, %v1151
        %v1153 = vmul.f32 %v1148, %v1152
        %vm1154 = vweird.f32 %v1017
        %vm1155 = vweird.f32 %v1148
        %vm1156 = vmor %vm1154, %vm1155
        %v1157 = vsel %vm1156, %v1148, %v1153
        %v1158 = vrsqrt.pop %v1018
        %v1159 = vmul.f32 %v1158, %v1018
        %v1160 = vmul.f32 %v1159, %v1158
        %v1161 = vmul.f32 0.5, %v1160
        %v1162 = vsub.f32 1.5, %v1161
        %v1163 = vmul.f32 %v1158, %v1162
        %vm1164 = vweird.f32 %v1018
        %vm1165 = vweird.f32 %v1158
        %vm1166 = vmor %vm1164, %vm1165
        %v1167 = vsel %vm1166, %v1158, %v1163
        %v1168 = vrsqrt.pop %v1019
        %v1169 = vmul.f32 %v1168, %v1019
        %v1170 = vmul.f32 %v1169, %v1168
        %v1171 = vmul.f32 0.5, %v1170
        %v1172 = vsub.f32 1.5, %v1171
        %v1173 = vmul.f32 %v1168, %v1172
        %vm1174 = vweird.f32 %v1019
        %vm1175 = vweird.f32 %v1168
        %vm1176 = vmor %vm1174, %vm1175
        %v1177 = vsel %vm1176, %v1168, %v1173
        %v1178 = vrsqrt.pop %v1020
        %v1179 = vmul.f32 %v1178, %v1020
        %v1180 = vmul.f32 %v1179, %v1178
        %v1181 = vmul.f32 0.5, %v1180
        %v1182 = vsub.f32 1.5, %v1181
        %v1183 = vmul.f32 %v1178, %v1182
        %vm1184 = vweird.f32 %v1020
        %vm1185 = vweird.f32 %v1178
        %vm1186 = vmor %vm1184, %vm1185
        %v1187 = vsel %vm1186, %v1178, %v1183
        %v1188 = vrsqrt.pop %v1021
        %v1189 = vmul.f32 %v1188, %v1021
        %v1190 = vmul.f32 %v1189, %v1188
        %v1191 = vmul.f32 0.5, %v1190
        %v1192 = vsub.f32 1.5, %v1191
        %v1193 = vmul.f32 %v1188, %v1192
        %vm1194 = vweird.f32 %v1021
        %vm1195 = vweird.f32 %v1188
        %vm1196 = vmor %vm1194, %vm1195
        %v1197 = vsel %vm1196, %v1188, %v1193
        %v1198 = vrsqrt.pop %v1022
        %v1199 = vmul.f32 %v1198, %v1022
        %v1200 = vmul.f32 %v1199, %v1198
        %v1201 = vmul.f32 0.5, %v1200
        %v1202 = vsub.f32 1.5, %v1201
        %v1203 = vmul.f32 %v1198, %v1202
        %vm1204 = vweird.f32 %v1022
        %vm1205 = vweird.f32 %v1198
        %vm1206 = vmor %vm1204, %vm1205
        %v1207 = vsel %vm1206, %v1198, %v1203
        %v1208 = vrsqrt.pop %v1023
        %v1209 = vmul.f32 %v1208, %v1023
        %v1210 = vmul.f32 %v1209, %v1208
        %v1211 = vmul.f32 0.5, %v1210
        %v1212 = vsub.f32 1.5, %v1211
        %v1213 = vmul.f32 %v1208, %v1212
        %vm1214 = vweird.f32 %v1023
        %vm1215 = vweird.f32 %v1208
        %vm1216 = vmor %vm1214, %vm1215
        %v1217 = vsel %vm1216, %v1208, %v1213
        %v1218 = vrsqrt.pop %v1024
        %v1219 = vmul.f32 %v1218, %v1024
        %v1220 = vmul.f32 %v1219, %v1218
        %v1221 = vmul.f32 0.5, %v1220
        %v1222 = vsub.f32 1.5, %v1221
        %v1223 = vmul.f32 %v1218, %v1222
        %vm1224 = vweird.f32 %v1024
        %vm1225 = vweird.f32 %v1218
        %vm1226 = vmor %vm1224, %vm1225
        %v1227 = vsel %vm1226, %v1218, %v1223
        %v1228 = vrsqrt.pop %v1025
        %v1229 = vmul.f32 %v1228, %v1025
        %v1230 = vmul.f32 %v1229, %v1228
        %v1231 = vmul.f32 0.5, %v1230
        %v1232 = vsub.f32 1.5, %v1231
        %v1233 = vmul.f32 %v1228, %v1232
        %vm1234 = vweird.f32 %v1025
        %vm1235 = vweird.f32 %v1228
        %vm1236 = vmor %vm1234, %vm1235
        %v1237 = vsel %vm1236, %v1228, %v1233
        %v1238 = vrsqrt.pop %v1026
        %v1239 = vmul.f32 %v1238, %v1026
        %v1240 = vmul.f32 %v1239, %v1238
        %v1241 = vmul.f32 0.5, %v1240
        %v1242 = vsub.f32 1.5, %v1241
        %v1243 = vmul.f32 %v1238, %v1242
        %vm1244 = vweird.f32 %v1026
        %vm1245 = vweird.f32 %v1238
        %vm1246 = vmor %vm1244, %vm1245
        %v1247 = vsel %vm1246, %v1238, %v1243
        %v1248 = vrsqrt.pop %v1027
        %v1249 = vmul.f32 %v1248, %v1027
        %v1250 = vmul.f32 %v1249, %v1248
        %v1251 = vmul.f32 0.5, %v1250
        %v1252 = vsub.f32 1.5, %v1251
        %v1253 = vmul.f32 %v1248, %v1252
        %vm1254 = vweird.f32 %v1027
        %vm1255 = vweird.f32 %v1248
        %vm1256 = vmor %vm1254, %vm1255
        %v1257 = vsel %vm1256, %v1248, %v1253
        %v1258 = vrsqrt.pop %v1028
        %v1259 = vmul.f32 %v1258, %v1028
        %v1260 = vmul.f32 %v1259, %v1258
        %v1261 = vmul.f32 0.5, %v1260
        %v1262 = vsub.f32 1.5, %v1261
        %v1263 = vmul.f32 %v1258, %v1262
        %vm1264 = vweird.f32 %v1028
        %vm1265 = vweird.f32 %v1258
        %vm1266 = vmor %vm1264, %vm1265
        %v1267 = vsel %vm1266, %v1258, %v1263
        %v1268 = vrsqrt.pop %v1029
        %v1269 = vmul.f32 %v1268, %v1029
        %v1270 = vmul.f32 %v1269, %v1268
        %v1271 = vmul.f32 0.5, %v1270
        %v1272 = vsub.f32 1.5, %v1271
        %v1273 = vmul.f32 %v1268, %v1272
        %vm1274 = vweird.f32 %v1029
        %vm1275 = vweird.f32 %v1268
        %vm1276 = vmor %vm1274, %vm1275
        %v1277 = vsel %vm1276, %v1268, %v1273
        %v1278 = vrsqrt.pop %v1030
        %v1279 = vmul.f32 %v1278, %v1030
        %v1280 = vmul.f32 %v1279, %v1278
        %v1281 = vmul.f32 0.5, %v1280
        %v1282 = vsub.f32 1.5, %v1281
        %v1283 = vmul.f32 %v1278, %v1282
        %vm1284 = vweird.f32 %v1030
        %vm1285 = vweird.f32 %v1278
        %vm1286 = vmor %vm1284, %vm1285
        %v1287 = vsel %vm1286, %v1278, %v1283
        %v1288 = vrsqrt.pop %v1031
        %v1289 = vmul.f32 %v1288, %v1031
        %v1290 = vmul.f32 %v1289, %v1288
        %v1291 = vmul.f32 0.5, %v1290
        %v1292 = vsub.f32 1.5, %v1291
        %v1293 = vmul.f32 %v1288, %v1292
        %vm1294 = vweird.f32 %v1031
        %vm1295 = vweird.f32 %v1288
        %vm1296 = vmor %vm1294, %vm1295
        %v1297 = vsel %vm1296, %v1288, %v1293
        %v1298 = vrsqrt.pop %v1032
        %v1299 = vmul.f32 %v1298, %v1032
        %v1300 = vmul.f32 %v1299, %v1298
        %v1301 = vmul.f32 0.5, %v1300
        %v1302 = vsub.f32 1.5, %v1301
        %v1303 = vmul.f32 %v1298, %v1302
        %vm1304 = vweird.f32 %v1032
        %vm1305 = vweird.f32 %v1298
        %vm1306 = vmor %vm1304, %vm1305
        %v1307 = vsel %vm1306, %v1298, %v1303
        %v1308 = vrsqrt.pop %v1033
        %v1309 = vmul.f32 %v1308, %v1033
        %v1310 = vmul.f32 %v1309, %v1308
        %v1311 = vmul.f32 0.5, %v1310
        %v1312 = vsub.f32 1.5, %v1311
        %v1313 = vmul.f32 %v1308, %v1312
        %vm1314 = vweird.f32 %v1033
        %vm1315 = vweird.f32 %v1308
        %vm1316 = vmor %vm1314, %vm1315
        %v1317 = vsel %vm1316, %v1308, %v1313
        %v1318 = vrsqrt.pop %v1034
        %v1319 = vmul.f32 %v1318, %v1034
        %v1320 = vmul.f32 %v1319, %v1318
        %v1321 = vmul.f32 0.5, %v1320
        %v1322 = vsub.f32 1.5, %v1321
        %v1323 = vmul.f32 %v1318, %v1322
        %vm1324 = vweird.f32 %v1034
        %vm1325 = vweird.f32 %v1318
        %vm1326 = vmor %vm1324, %vm1325
        %v1327 = vsel %vm1326, %v1318, %v1323
        %v1328 = vrsqrt.pop %v1035
        %v1329 = vmul.f32 %v1328, %v1035
        %v1330 = vmul.f32 %v1329, %v1328
        %v1331 = vmul.f32 0.5, %v1330
        %v1332 = vsub.f32 1.5, %v1331
        %v1333 = vmul.f32 %v1328, %v1332
        %vm1334 = vweird.f32 %v1035
        %vm1335 = vweird.f32 %v1328
        %vm1336 = vmor %vm1334, %vm1335
        %v1337 = vsel %vm1336, %v1328, %v1333
        %v1338 = vrsqrt.pop %v1036
        %v1339 = vmul.f32 %v1338, %v1036
        %v1340 = vmul.f32 %v1339, %v1338
        %v1341 = vmul.f32 0.5, %v1340
        %v1342 = vsub.f32 1.5, %v1341
        %v1343 = vmul.f32 %v1338, %v1342
        %vm1344 = vweird.f32 %v1036
        %vm1345 = vweird.f32 %v1338
        %vm1346 = vmor %vm1344, %vm1345
        %v1347 = vsel %vm1346, %v1338, %v1343
        %v1348 = vrsqrt.pop %v1037
        %v1349 = vmul.f32 %v1348, %v1037
        %v1350 = vmul.f32 %v1349, %v1348
        %v1351 = vmul.f32 0.5, %v1350
        %v1352 = vsub.f32 1.5, %v1351
        %v1353 = vmul.f32 %v1348, %v1352
        %vm1354 = vweird.f32 %v1037
        %vm1355 = vweird.f32 %v1348
        %vm1356 = vmor %vm1354, %vm1355
        %v1357 = vsel %vm1356, %v1348, %v1353
        %v1358 = vmul.f32 %v846, %v1047
        %v1359 = vmul.f32 %v847, %v1057
        %v1360 = vmul.f32 %v848, %v1067
        %v1361 = vmul.f32 %v849, %v1077
        %v1362 = vmul.f32 %v850, %v1087
        %v1363 = vmul.f32 %v851, %v1097
        %v1364 = vmul.f32 %v852, %v1107
        %v1365 = vmul.f32 %v853, %v1117
        %v1366 = vmul.f32 %v854, %v1127
        %v1367 = vmul.f32 %v855, %v1137
        %v1368 = vmul.f32 %v856, %v1147
        %v1369 = vmul.f32 %v857, %v1157
        %v1370 = vmul.f32 %v858, %v1167
        %v1371 = vmul.f32 %v859, %v1177
        %v1372 = vmul.f32 %v860, %v1187
        %v1373 = vmul.f32 %v861, %v1197
        %v1374 = vmul.f32 %v862, %v1207
        %v1375 = vmul.f32 %v863, %v1217
        %v1376 = vmul.f32 %v864, %v1227
        %v1377 = vmul.f32 %v865, %v1237
        %v1378 = vmul.f32 %v866, %v1247
        %v1379 = vmul.f32 %v867, %v1257
        %v1380 = vmul.f32 %v868, %v1267
        %v1381 = vmul.f32 %v869, %v1277
        %v1382 = vmul.f32 %v870, %v1287
        %v1383 = vmul.f32 %v871, %v1297
        %v1384 = vmul.f32 %v872, %v1307
        %v1385 = vmul.f32 %v873, %v1317
        %v1386 = vmul.f32 %v874, %v1327
        %v1387 = vmul.f32 %v875, %v1337
        %v1388 = vmul.f32 %v876, %v1347
        %v1389 = vmul.f32 %v877, %v1357
        %v1390 = vperm.slane %v307, 1
        %v1391 = vmul.f32 %v1358, %v1390
        %v1392 = vmul.f32 %v1359, %v1390
        %v1393 = vmul.f32 %v1360, %v1390
        %v1394 = vmul.f32 %v1361, %v1390
        %v1395 = vmul.f32 %v1362, %v1390
        %v1396 = vmul.f32 %v1363, %v1390
        %v1397 = vmul.f32 %v1364, %v1390
        %v1398 = vmul.f32 %v1365, %v1390
        %v1399 = vmul.f32 %v1366, %v1390
        %v1400 = vmul.f32 %v1367, %v1390
        %v1401 = vmul.f32 %v1368, %v1390
        %v1402 = vmul.f32 %v1369, %v1390
        %v1403 = vmul.f32 %v1370, %v1390
        %v1404 = vmul.f32 %v1371, %v1390
        %v1405 = vmul.f32 %v1372, %v1390
        %v1406 = vmul.f32 %v1373, %v1390
        %v1407 = vmul.f32 %v1374, %v1390
        %v1408 = vmul.f32 %v1375, %v1390
        %v1409 = vmul.f32 %v1376, %v1390
        %v1410 = vmul.f32 %v1377, %v1390
        %v1411 = vmul.f32 %v1378, %v1390
        %v1412 = vmul.f32 %v1379, %v1390
        %v1413 = vmul.f32 %v1380, %v1390
        %v1414 = vmul.f32 %v1381, %v1390
        %v1415 = vmul.f32 %v1382, %v1390
        %v1416 = vmul.f32 %v1383, %v1390
        %v1417 = vmul.f32 %v1384, %v1390
        %v1418 = vmul.f32 %v1385, %v1390
        %v1419 = vmul.f32 %v1386, %v1390
        %v1420 = vmul.f32 %v1387, %v1390
        %v1421 = vmul.f32 %v1388, %v1390
        %v1422 = vmul.f32 %v1389, %v1390
        %v1423 = vperm.slane %v307, 2
        %v1424 = vadd.f32 %v1391, %v1423
        %v1425 = vadd.f32 %v1392, %v1423
        %v1426 = vadd.f32 %v1393, %v1423
        %v1427 = vadd.f32 %v1394, %v1423
        %v1428 = vadd.f32 %v1395, %v1423
        %v1429 = vadd.f32 %v1396, %v1423
        %v1430 = vadd.f32 %v1397, %v1423
        %v1431 = vadd.f32 %v1398, %v1423
        %v1432 = vadd.f32 %v1399, %v1423
        %v1433 = vadd.f32 %v1400, %v1423
        %v1434 = vadd.f32 %v1401, %v1423
        %v1435 = vadd.f32 %v1402, %v1423
        %v1436 = vadd.f32 %v1403, %v1423
        %v1437 = vadd.f32 %v1404, %v1423
        %v1438 = vadd.f32 %v1405, %v1423
        %v1439 = vadd.f32 %v1406, %v1423
        %v1440 = vadd.f32 %v1407, %v1423
        %v1441 = vadd.f32 %v1408, %v1423
        %v1442 = vadd.f32 %v1409, %v1423
        %v1443 = vadd.f32 %v1410, %v1423
        %v1444 = vadd.f32 %v1411, %v1423
        %v1445 = vadd.f32 %v1412, %v1423
        %v1446 = vadd.f32 %v1413, %v1423
        %v1447 = vadd.f32 %v1414, %v1423
        %v1448 = vadd.f32 %v1415, %v1423
        %v1449 = vadd.f32 %v1416, %v1423
        %v1450 = vadd.f32 %v1417, %v1423
        %v1451 = vadd.f32 %v1418, %v1423
        %v1452 = vadd.f32 %v1419, %v1423
        %v1453 = vadd.f32 %v1420, %v1423
        %v1454 = vadd.f32 %v1421, %v1423
        %v1455 = vadd.f32 %v1422, %v1423
        %v1456 = vpack.c.bf16 %v1424, %v1424
        %v1457 = vpack.c.bf16 %v1425, %v1425
        %v1458 = vpack.c.bf16 %v1426, %v1426
        %v1459 = vpack.c.bf16 %v1427, %v1427
        %v1460 = vpack.c.bf16 %v1428, %v1428
        %v1461 = vpack.c.bf16 %v1429, %v1429
        %v1462 = vpack.c.bf16 %v1430, %v1430
        %v1463 = vpack.c.bf16 %v1431, %v1431
        %v1464 = vpack.c.bf16 %v1432, %v1432
        %v1465 = vpack.c.bf16 %v1433, %v1433
        %v1466 = vpack.c.bf16 %v1434, %v1434
        %v1467 = vpack.c.bf16 %v1435, %v1435
        %v1468 = vpack.c.bf16 %v1436, %v1436
        %v1469 = vpack.c.bf16 %v1437, %v1437
        %v1470 = vpack.c.bf16 %v1438, %v1438
        %v1471 = vpack.c.bf16 %v1439, %v1439
        %v1472 = vpack.c.bf16 %v1440, %v1440
        %v1473 = vpack.c.bf16 %v1441, %v1441
        %v1474 = vpack.c.bf16 %v1442, %v1442
        %v1475 = vpack.c.bf16 %v1443, %v1443
        %v1476 = vpack.c.bf16 %v1444, %v1444
        %v1477 = vpack.c.bf16 %v1445, %v1445
        %v1478 = vpack.c.bf16 %v1446, %v1446
        %v1479 = vpack.c.bf16 %v1447, %v1447
        %v1480 = vpack.c.bf16 %v1448, %v1448
        %v1481 = vpack.c.bf16 %v1449, %v1449
        %v1482 = vpack.c.bf16 %v1450, %v1450
        %v1483 = vpack.c.bf16 %v1451, %v1451
        %v1484 = vpack.c.bf16 %v1452, %v1452
        %v1485 = vpack.c.bf16 %v1453, %v1453
        %v1486 = vpack.c.bf16 %v1454, %v1454
        %v1487 = vpack.c.bf16 %v1455, %v1455
        %1488 = vst [vmem:[%s240] sm:$0xf] %v1456
        %1489 = vst [vmem:[%s240 + $0x4] sm:$0xf] %v1457
        %1490 = vst [vmem:[%s240 + $0x8] sm:$0xf] %v1458
        %1491 = vst [vmem:[%s240 + $0xc] sm:$0xf] %v1459
        %1492 = vst [vmem:[%s240 + $0x10] sm:$0xf] %v1460
        %1493 = vst [vmem:[%s240 + $0x14] sm:$0xf] %v1461
        %1494 = vst [vmem:[%s240 + $0x18] sm:$0xf] %v1462
        %1495 = vst [vmem:[%s240 + $0x1c] sm:$0xf] %v1463
        %1496 = vst [vmem:[%s240 + $0x20] sm:$0xf] %v1464
        %1497 = vst [vmem:[%s240 + $0x24] sm:$0xf] %v1465
        %1498 = vst [vmem:[%s240 + $0x28] sm:$0xf] %v1466
        %1499 = vst [vmem:[%s240 + $0x2c] sm:$0xf] %v1467
        %1500 = vst [vmem:[%s240 + $0x30] sm:$0xf] %v1468
        %1501 = vst [vmem:[%s240 + $0x34] sm:$0xf] %v1469
        %1502 = vst [vmem:[%s240 + $0x38] sm:$0xf] %v1470
        %1503 = vst [vmem:[%s240 + $0x3c] sm:$0xf] %v1471
        %1504 = vst [vmem:[%s240 + $0x40] sm:$0xf] %v1472
        %1505 = vst [vmem:[%s240 + $0x44] sm:$0xf] %v1473
        %1506 = vst [vmem:[%s240 + $0x48] sm:$0xf] %v1474
        %1507 = vst [vmem:[%s240 + $0x4c] sm:$0xf] %v1475
        %1508 = vst [vmem:[%s240 + $0x50] sm:$0xf] %v1476
        %1509 = vst [vmem:[%s240 + $0x54] sm:$0xf] %v1477
        %1510 = vst [vmem:[%s240 + $0x58] sm:$0xf] %v1478
        %1511 = vst [vmem:[%s240 + $0x5c] sm:$0xf] %v1479
        %1512 = vst [vmem:[%s240 + $0x60] sm:$0xf] %v1480
        %1513 = vst [vmem:[%s240 + $0x64] sm:$0xf] %v1481
        %1514 = vst [vmem:[%s240 + $0x68] sm:$0xf] %v1482
        %1515 = vst [vmem:[%s240 + $0x6c] sm:$0xf] %v1483
        %1516 = vst [vmem:[%s240 + $0x70] sm:$0xf] %v1484
        %1517 = vst [vmem:[%s240 + $0x74] sm:$0xf] %v1485
        %1518 = vst [vmem:[%s240 + $0x78] sm:$0xf] %v1486
        %1519 = vst [vmem:[%s240 + $0x7c] sm:$0xf] %v1487
        %s1520 = sand.u32 %s113, 1
        %s1521 = scalar_lea.sflag [#allocation4], %s1520
        %s1522 = sand.u32 %s113, 1
        %s1523 = smul.addr %s1522, 128
        %s1524 = scalar_lea.vmem [#allocation8], %s1523
        // Predicated region
        $region45: #{tpu_custom_call.1} parent=31 // pred_check
          %p1525 = pneg %p123
        $region46: #{tpu_custom_call.1} parent=31 // pred_check_branch
          %1527 = sbr.rel (%p1525) target = $region48
        $region47: #{tpu_custom_call.1} parent=31 // pred_region
          %s1528 = smul.u32 32, %s25
          %1530 = vsyncadd %s1521, 0
          %s1531 = smul.addr %s26, 32
          %s1532 = sadd.s32 %s1528, %s1531
          %s1533 = smul.addr %s1532, 4
          %s1534 = scalar_lea.hbm %s3, %s1533
          %s1535 = sshll.u32 %s1524, 4
          %s1536 = int_to_ptr.vmem [resolvable:$true] %s1535
          %s1537 = sshll.u32 %s1534, 4
          %s1538 = int_to_ptr.hbm [resolvable:$true] %s1537
          %1543 = dma.vmem_to_hbm [thread:$0]  %s1536, 2048, %s1538, %s1521, 64, 64, 4
        $region48: #{tpu_custom_call.1} parent=31 // pred_fallthru
          _
      $region32: #{tpu_custom_call.1} parent=5 // pred_fallthru
        _
      %p1544 = scmp.le.s32.totalorder 2, %s16
      // Predicated region
      $region49: #{tpu_custom_call.1} parent=5 // pred_check
        %p1545 = pneg %p1544
      $region50: #{tpu_custom_call.1} parent=5 // pred_check_branch
        %1547 = sbr.rel (%p1545) target = $region52
      $region51: #{tpu_custom_call.1} parent=5 // pred_region
        %s1548 = ssub.s32 %s16, 2
        // Predicated region
        $region53: #{tpu_custom_call.1} parent=51 // pred_check
          %p1549 = pneg %p129
        $region54: #{tpu_custom_call.1} parent=51 // pred_check_branch
          %1551 = sbr.rel (%p1549) target = $region56
        $region55: #{tpu_custom_call.1} parent=51 // pred_region
          %s1552 = sand.u32 %s114, 1
          %s1553 = scalar_lea.sflag [#allocation4], %s1552
          %s1554 = sand.u32 %s114, 1
          %s1555 = smul.addr %s1554, 128
          %s1556 = scalar_lea.vmem [#allocation8], %s1555
          %1558 = dma.done %s1553, 2048
        $region56: #{tpu_custom_call.1} parent=51 // pred_fallthru
          _
      $region52: #{tpu_custom_call.1} parent=5 // pred_fallthru
        _
    $region6: #{tpu_custom_call.1} parent=1 // loop_footer
      %s20 = sadd.s32 1, %s16
    $region7: #{tpu_custom_call.1} parent=1 // loop_footer_branch
      %15 = sbr.rel target = $region3
    $region8: #{tpu_custom_call.1} parent=1 // loop_exit
      _
    %1559 = vsyncpa [#allocation3], 1
    %s1560 = scalar_lea.sflag [#allocation3], 1
    %1561 = vsyncpa %s1560, 1
    %1562 = vsyncpa [#allocation6], 1
    %1563 = vsyncpa [#allocation4], 1
    %s1564 = scalar_lea.sflag [#allocation4], 1
    %1565 = vsyncpa %s1564, 1

</llo_original>
